<compile_context>
chip_gen: v7x
topology: tpu7x:2x2x1
jax: 0.10.0
libtpu: 0.0.40
codegen_flags: <defaults>
</compile_context>

<pallas_src>
import jax
import jax.numpy as jnp
from jax.experimental import pallas as pl
from jax.experimental.pallas import tpu as pltpu

# ---- problem sizes (small, consistent with an NCHW VAE) --------------------
B, C, H, W = 2, 4, 16, 16
D = C * H * W          # 1024 flattened input features
Z = 32                 # latent dim; encoder emits 2*Z (loc || log_scale)


def _round_up(n: int, m: int) -> int:
    return ((n + m - 1) // m) * m


def _choose_tm(b: int) -> int:
    """Batch tile: multiple of 8 (f32 sublane), >=2 grid steps when possible."""
    if b <= 8:
        return 8                                   # tiny batch: one minimal tile
    if b < 512:
        return _round_up(pl.cdiv(b, 2), 8)         # >= 2 grid steps (v7x megacore)
    return 256                                     # 128-multiple fills MXU rows


# ---- Pallas kernel ----------------------------------------------------------
def vae_forward_kernel(x_ref, we_ref, wd_ref, bf_ref, out_ref):
    """Fused eval-mode VAE forward for one batch tile.

    x_ref   : [TM, D] f32    flattened input tile (streamed per grid step)
    we_ref  : [D, Z]  bf16   encoder weight, loc half only (resident across grid)
    wd_ref  : [Z, D]  bf16   decoder weight (resident)
    bf_ref  : [1, D]  f32    fused bias  b_enc_loc @ W_dec + b_dec (resident)
    out_ref : [TM, D] bf16   reconstruction tile
    """
    # cast on-chip (VPU) right before the MXU — x is only streamed once, as f32
    x = x_ref[...].astype(jnp.bfloat16)
    # encoder loc half == posterior.mean (eval-mode forward never uses scale);
    # encoder bias is folded into bf_ref, so no [TM, Z] broadcast add here
    loc = jnp.dot(x, we_ref[...], preferred_element_type=jnp.float32)
    # decoder (bf16 MXU inputs, f32 accumulation), fused bias added once
    recon = jnp.dot(loc.astype(jnp.bfloat16), wd_ref[...],
                    preferred_element_type=jnp.float32) + bf_ref[...]
    out_ref[...] = recon.astype(out_ref.dtype)


def vae_forward(x_nchw, w_enc, b_enc, w_dec, b_dec):
    """x_nchw: [B, C, H, W] f32 -> recon: [B, C, H, W] bf16."""
    b, c, h, w = x_nchw.shape
    d = c * h * w
    z = w_dec.shape[0]
    tm = _choose_tm(b)

    # --- wrapper-side prep (one-time, cheap; all on tiny weight tensors) -----
    # Only the loc half of the encoder output is used: slice weights so the
    # log_scale half is never DMA'd or computed.
    w_enc_loc = w_enc[:, :z].astype(jnp.bfloat16)                       # [D, Z]
    w_dec_b = w_dec.astype(jnp.bfloat16)                                # [Z, D]
    # Fold encoder bias through the (f32) decoder: (x@We + be)@Wd + bd
    #   == (x@We)@Wd + (be@Wd + bd)
    b_fused = (b_enc[:z].astype(jnp.float32) @ w_dec.astype(jnp.float32)
               + b_dec.astype(jnp.float32)).reshape(1, d)               # [1, D]

    # Flatten (same row-major order as torch .reshape(B, -1)); keep f32 —
    # the bf16 cast happens inside the kernel. Pad only if needed.
    x_flat = x_nchw.reshape(b, d)
    b_pad = pl.cdiv(b, tm) * tm
    if b_pad != b:
        # TODO(synk): for large ragged batches, handle the tail with a separate
        # small call instead of re-materializing x via jnp.pad.
        x_flat = jnp.pad(x_flat, ((0, b_pad - b), (0, 0)))

    cost = pl.CostEstimate(
        flops=4 * b_pad * d * z,                       # enc (2*M*D*Z) + dec (2*M*Z*D)
        transcendentals=0,
        bytes_accessed=(b_pad * d * 4                  # x (f32 in)
                        + w_enc_loc.size * 2 + w_dec_b.size * 2   # bf16 weights
                        + b_fused.size * 4             # fused bias
                        + b_pad * d * 2),              # recon (bf16 out)
    )

    resident = dict(pipeline_mode=pl.Buffered(1))      # constant index_map -> 1 buffer

    recon_flat = pl.pallas_call(
        vae_forward_kernel,
        out_shape=jax.ShapeDtypeStruct((b_pad, d), jnp.bfloat16),
        grid=(b_pad // tm,),
        in_specs=[
            pl.BlockSpec((tm, d), lambda i: (i, 0)),               # x: streamed f32
            pl.BlockSpec((d, z), lambda i: (0, 0), **resident),    # W_enc[:, :Z]
            pl.BlockSpec((z, d), lambda i: (0, 0), **resident),    # W_dec
            pl.BlockSpec((1, d), lambda i: (0, 0), **resident),    # fused bias
        ],
        out_specs=pl.BlockSpec((tm, d), lambda i: (i, 0)),         # lane-dense bf16
        compiler_params=pltpu.CompilerParams(
            # batch tiles are independent -> shard across both TCs on v7x
            dimension_semantics=("parallel",),
        ),
        cost_estimate=cost,
    )(x_flat, w_enc_loc, w_dec_b, b_fused)

    return recon_flat[:b].reshape(b, c, h, w)


# TODO(synk): forward_train() needs posterior.rsample() (reparameterized Normal noise)
# and the unit-Normal prior / KL term; only the eval-mode forward() hot path is
# implemented here.


if __name__ == "__main__":
    key = jax.random.PRNGKey(0)
    kx, k1, k2, k3, k4 = jax.random.split(key, 5)

    # deterministic synthetic parameters (no checkpoint loading)
    x = jax.random.normal(kx, (B, C, H, W), dtype=jnp.float32)
    w_enc = jax.random.normal(k1, (D, 2 * Z), dtype=jnp.float32) * 0.02
    b_enc = jax.random.normal(k2, (2 * Z,), dtype=jnp.float32) * 0.02
    w_dec = jax.random.normal(k3, (Z, D), dtype=jnp.float32) * 0.02
    b_dec = jax.random.normal(k4, (D,), dtype=jnp.float32) * 0.02

    recon = vae_forward(x, w_enc, b_enc, w_dec, b_dec)
    recon = jax.block_until_ready(recon)

    # plain-JAX f32 reference (looser tolerance: kernel uses bf16 MXU inputs,
    # f32 accumulation, bf16 output)
    x_flat = x.reshape(B, D)
    h_ref = x_flat @ w_enc + b_enc
    loc_ref = h_ref[:, :Z]                      # torch.chunk(2, dim=1)[0] == posterior.mean
    recon_ref = (loc_ref @ w_dec + b_dec).reshape(B, C, H, W)

    assert recon.shape == (B, C, H, W)
    assert jnp.allclose(recon.astype(jnp.float32), recon_ref, atol=3e-2, rtol=3e-2), (
        float(jnp.max(jnp.abs(recon.astype(jnp.float32) - recon_ref)))
    )
    print("KERNEL_OK")
</pallas_src>

<mosaic_0001>
module attributes {stable_mosaic.version = 11 : i64} {
  func.func @vae_forward_kernel(%arg0: i32, %arg1: memref<8x1024xf32, #tpu.memory_space<vmem>>, %arg2: memref<1024x32xbf16, #tpu.memory_space<vmem>>, %arg3: memref<32x1024xbf16, #tpu.memory_space<vmem>>, %arg4: memref<1x1024xf32, #tpu.memory_space<vmem>>, %arg5: memref<8x1024xbf16, #tpu.memory_space<vmem>>) attributes {dimension_semantics = [#tpu.dimension_semantics<parallel>], iteration_bounds = array<i64: 1>, scalar_prefetch = 0 : i64, scratch_operands = 0 : i64, tpu.core_type = #tpu.core_type<tc>, window_params = [{transform_indices = @transform_0, window_bounds = array<i64: 8, 1024>}, {pipeline_mode = #tpu.pipeline_mode<synchronous>, transform_indices = @transform_1, window_bounds = array<i64: 1024, 32>}, {pipeline_mode = #tpu.pipeline_mode<synchronous>, transform_indices = @transform_2, window_bounds = array<i64: 32, 1024>}, {pipeline_mode = #tpu.pipeline_mode<synchronous>, transform_indices = @transform_3, window_bounds = array<i64: 1, 1024>}, {transform_indices = @transform_4, window_bounds = array<i64: 8, 1024>}]} {
    %c0 = arith.constant 0 : index
    %c0_0 = arith.constant 0 : index
    %0 = vector.load %arg1[%c0, %c0_0] : memref<8x1024xf32, #tpu.memory_space<vmem>>, vector<8x1024xf32>
    %1 = arith.truncf %0 : vector<8x1024xf32> to vector<8x1024xbf16>
    %c0_1 = arith.constant 0 : index
    %c0_2 = arith.constant 0 : index
    %2 = vector.load %arg2[%c0_1, %c0_2] : memref<1024x32xbf16, #tpu.memory_space<vmem>>, vector<1024x32xbf16>
    %cst = arith.constant dense<0.000000e+00> : vector<8x32xf32>
    %3 = tpu.matmul %1, %2, %cst {dimension_numbers = #tpu.dot_dimension_numbers<[1], [0], [0], [1], [0, 0, 1, 1], [], []>} : vector<8x1024xbf16>, vector<1024x32xbf16>, vector<8x32xf32> -> vector<8x32xf32>
    %4 = arith.truncf %3 : vector<8x32xf32> to vector<8x32xbf16>
    %c0_3 = arith.constant 0 : index
    %c0_4 = arith.constant 0 : index
    %5 = vector.load %arg3[%c0_3, %c0_4] : memref<32x1024xbf16, #tpu.memory_space<vmem>>, vector<32x1024xbf16>
    %cst_5 = arith.constant dense<0.000000e+00> : vector<8x1024xf32>
    %6 = tpu.matmul %4, %5, %cst_5 {dimension_numbers = #tpu.dot_dimension_numbers<[1], [0], [0], [1], [0, 0, 1, 1], [], []>} : vector<8x32xbf16>, vector<32x1024xbf16>, vector<8x1024xf32> -> vector<8x1024xf32>
    %c0_6 = arith.constant 0 : index
    %c0_7 = arith.constant 0 : index
    %7 = vector.load %arg4[%c0_6, %c0_7] : memref<1x1024xf32, #tpu.memory_space<vmem>>, vector<1x1024xf32>
    %8 = vector.broadcast %7 : vector<1x1024xf32> to vector<8x1024xf32>
    %9 = arith.addf %6, %8 : vector<8x1024xf32>
    %10 = arith.truncf %9 : vector<8x1024xf32> to vector<8x1024xbf16>
    %c0_8 = arith.constant 0 : index
    %c0_9 = arith.constant 0 : index
    %11 = vector.load %arg5[%c0_8, %c0_9] : memref<8x1024xbf16, #tpu.memory_space<vmem>>, vector<8x1024xbf16>
    tpu.vector_store %arg5[%c0_8, %c0_9], %10 {strides = array<i32>} : memref<8x1024xbf16, #tpu.memory_space<vmem>>, vector<8x1024xbf16>,
    return
  }
  func.func @transform_0(%arg0: i32) -> (i32, i32) {
    %c0_i32 = arith.constant 0 : i32
    %c0_i32_0 = arith.constant 0 : i32
    return %arg0, %c0_i32 : i32, i32
  }
  func.func @transform_1(%arg0: i32) -> (i32, i32) {
    %c0_i32 = arith.constant 0 : i32
    %c0_i32_0 = arith.constant 0 : i32
    %c0_i32_1 = arith.constant 0 : i32
    return %c0_i32, %c0_i32_0 : i32, i32
  }
  func.func @transform_2(%arg0: i32) -> (i32, i32) {
    %c0_i32 = arith.constant 0 : i32
    %c0_i32_0 = arith.constant 0 : i32
    %c0_i32_1 = arith.constant 0 : i32
    return %c0_i32, %c0_i32_0 : i32, i32
  }
  func.func @transform_3(%arg0: i32) -> (i32, i32) {
    %c0_i32 = arith.constant 0 : i32
    %c0_i32_0 = arith.constant 0 : i32
    %c0_i32_1 = arith.constant 0 : i32
    return %c0_i32, %c0_i32_0 : i32, i32
  }
  func.func @transform_4(%arg0: i32) -> (i32, i32) {
    %c0_i32 = arith.constant 0 : i32
    %c0_i32_0 = arith.constant 0 : i32
    return %arg0, %c0_i32 : i32, i32
  }
}

</mosaic_0001>

<llo_original>
// kernel: tpu_custom_call.1
$region0: #{tpu_custom_call.1}
  #allocation0 [shape = 'u32[]', space=smem, size = 0x4, offset = 0x4, fixed_abs, tag = 'smem constant byte address 0x4 - core index']
  #allocation1 [shape = 'u32[144,128]{1,0:T(1,128)}', space=vmem, size = 0x12000, scoped, tag = 'internal scratch']
  %s0 = inlined_call_operand.vmem [shape: f32[8,1024], index: 0, kind: input, shape index: {}]
  %s1 = inlined_call_operand.vmem [shape: bf16[1024,32], index: 1, kind: input, shape index: {}]
  %s2 = inlined_call_operand.vmem [shape: bf16[32,1024], index: 2, kind: input, shape index: {}]
  %s3 = inlined_call_operand.vmem [shape: f32[1,1024], index: 3, kind: input, shape index: {}]
  %s4 = inlined_call_operand.hbm [shape: bf16[8,1024], index: 4, kind: output, shape index: {}]
  %s5 = sld [smem:[#allocation0]]
  $region26: #{tpu_custom_call.1} parent=0
    _
  %s7 = ssub.s32 1, %s5
  %s8 = scalar_select 0, %s7, %s5
  $region1: #{tpu_custom_call.1} parent=0
    #allocation2 [shape = 'u8[16384]{0}', space=vmem, size = 0x4000, scoped, tag = 'output window, operand 0, single buffered']
    #allocation3 [shape = 's32[1]{0}', space=sflag, size = 0x4, scoped, tag = 'scoped memory for tpu_custom_call.1']
    %9 = vsyncpa [#allocation3], 0
    // Predicated region
    $region2: #{tpu_custom_call.1} parent=1 // pred_check
      _
    $region3: #{tpu_custom_call.1} parent=1 // pred_check_branch
      %11 = sbr.rel (0) target = $region5
    $region4: #{tpu_custom_call.1} parent=1 // pred_region
      _
    $region5: #{tpu_custom_call.1} parent=1 // pred_fallthru
      _
    // Predicated region
    $region6: #{tpu_custom_call.1} parent=1 // pred_check
      _
    $region7: #{tpu_custom_call.1} parent=1 // pred_check_branch
      %13 = sbr.rel (0) target = $region9
    $region8: #{tpu_custom_call.1} parent=1 // pred_region
      _
    $region9: #{tpu_custom_call.1} parent=1 // pred_fallthru
      _
    // Predicated region
    $region10: #{tpu_custom_call.1} parent=1 // pred_check
      _
    $region11: #{tpu_custom_call.1} parent=1 // pred_check_branch
      %15 = sbr.rel (0) target = $region13
    $region12: #{tpu_custom_call.1} parent=1 // pred_region
      _
    $region13: #{tpu_custom_call.1} parent=1 // pred_fallthru
      _
    // Predicated region
    $region14: #{tpu_custom_call.1} parent=1 // pred_check
      _
    $region15: #{tpu_custom_call.1} parent=1 // pred_check_branch
      %17 = sbr.rel (0) target = $region17
    $region16: #{tpu_custom_call.1} parent=1 // pred_region
      _
    $region17: #{tpu_custom_call.1} parent=1 // pred_fallthru
      _
    %v19 = vld [vmem:[%s0] sm:$0xff]
    %v20 = vld [vmem:[%s0 + $0x8] sm:$0xff]
    %v21 = vld [vmem:[%s0 + $0x10] sm:$0xff]
    %v22 = vld [vmem:[%s0 + $0x18] sm:$0xff]
    %v23 = vld [vmem:[%s0 + $0x20] sm:$0xff]
    %v24 = vld [vmem:[%s0 + $0x28] sm:$0xff]
    %v25 = vld [vmem:[%s0 + $0x30] sm:$0xff]
    %v26 = vld [vmem:[%s0 + $0x38] sm:$0xff]
    %v27 = vpack.c.bf16 %v19, %v19
    %v28 = vpack.c.bf16 %v20, %v20
    %v29 = vpack.c.bf16 %v21, %v21
    %v30 = vpack.c.bf16 %v22, %v22
    %v31 = vpack.c.bf16 %v23, %v23
    %v32 = vpack.c.bf16 %v24, %v24
    %v33 = vpack.c.bf16 %v25, %v25
    %v34 = vpack.c.bf16 %v26, %v26
    %v35 = vld [vmem:[%s1] sm:$0xf]
    %v36 = vld [vmem:[%s1 + $0x4] sm:$0xf]
    %v37 = vld [vmem:[%s1 + $0x8] sm:$0xf]
    %v38 = vld [vmem:[%s1 + $0xc] sm:$0xf]
    %v39 = vld [vmem:[%s1 + $0x10] sm:$0xf]
    %v40 = vld [vmem:[%s1 + $0x14] sm:$0xf]
    %v41 = vld [vmem:[%s1 + $0x18] sm:$0xf]
    %v42 = vld [vmem:[%s1 + $0x1c] sm:$0xf]
    %v43 = vld [vmem:[%s1 + $0x20] sm:$0xf]
    %v44 = vld [vmem:[%s1 + $0x24] sm:$0xf]
    %v45 = vld [vmem:[%s1 + $0x28] sm:$0xf]
    %v46 = vld [vmem:[%s1 + $0x2c] sm:$0xf]
    %v47 = vld [vmem:[%s1 + $0x30] sm:$0xf]
    %v48 = vld [vmem:[%s1 + $0x34] sm:$0xf]
    %v49 = vld [vmem:[%s1 + $0x38] sm:$0xf]
    %v50 = vld [vmem:[%s1 + $0x3c] sm:$0xf]
    %v51 = vld [vmem:[%s1 + $0x40] sm:$0xf]
    %v52 = vld [vmem:[%s1 + $0x44] sm:$0xf]
    %v53 = vld [vmem:[%s1 + $0x48] sm:$0xf]
    %v54 = vld [vmem:[%s1 + $0x4c] sm:$0xf]
    %v55 = vld [vmem:[%s1 + $0x50] sm:$0xf]
    %v56 = vld [vmem:[%s1 + $0x54] sm:$0xf]
    %v57 = vld [vmem:[%s1 + $0x58] sm:$0xf]
    %v58 = vld [vmem:[%s1 + $0x5c] sm:$0xf]
    %v59 = vld [vmem:[%s1 + $0x60] sm:$0xf]
    %v60 = vld [vmem:[%s1 + $0x64] sm:$0xf]
    %v61 = vld [vmem:[%s1 + $0x68] sm:$0xf]
    %v62 = vld [vmem:[%s1 + $0x6c] sm:$0xf]
    %v63 = vld [vmem:[%s1 + $0x70] sm:$0xf]
    %v64 = vld [vmem:[%s1 + $0x74] sm:$0xf]
    %v65 = vld [vmem:[%s1 + $0x78] sm:$0xf]
    %v66 = vld [vmem:[%s1 + $0x7c] sm:$0xf]
    %v67 = vld [vmem:[%s1 + $0x80] sm:$0xf]
    %v68 = vld [vmem:[%s1 + $0x84] sm:$0xf]
    %v69 = vld [vmem:[%s1 + $0x88] sm:$0xf]
    %v70 = vld [vmem:[%s1 + $0x8c] sm:$0xf]
    %v71 = vld [vmem:[%s1 + $0x90] sm:$0xf]
    %v72 = vld [vmem:[%s1 + $0x94] sm:$0xf]
    %v73 = vld [vmem:[%s1 + $0x98] sm:$0xf]
    %v74 = vld [vmem:[%s1 + $0x9c] sm:$0xf]
    %v75 = vld [vmem:[%s1 + $0xa0] sm:$0xf]
    %v76 = vld [vmem:[%s1 + $0xa4] sm:$0xf]
    %v77 = vld [vmem:[%s1 + $0xa8] sm:$0xf]
    %v78 = vld [vmem:[%s1 + $0xac] sm:$0xf]
    %v79 = vld [vmem:[%s1 + $0xb0] sm:$0xf]
    %v80 = vld [vmem:[%s1 + $0xb4] sm:$0xf]
    %v81 = vld [vmem:[%s1 + $0xb8] sm:$0xf]
    %v82 = vld [vmem:[%s1 + $0xbc] sm:$0xf]
    %v83 = vld [vmem:[%s1 + $0xc0] sm:$0xf]
    %v84 = vld [vmem:[%s1 + $0xc4] sm:$0xf]
    %v85 = vld [vmem:[%s1 + $0xc8] sm:$0xf]
    %v86 = vld [vmem:[%s1 + $0xcc] sm:$0xf]
    %v87 = vld [vmem:[%s1 + $0xd0] sm:$0xf]
    %v88 = vld [vmem:[%s1 + $0xd4] sm:$0xf]
    %v89 = vld [vmem:[%s1 + $0xd8] sm:$0xf]
    %v90 = vld [vmem:[%s1 + $0xdc] sm:$0xf]
    %v91 = vld [vmem:[%s1 + $0xe0] sm:$0xf]
    %v92 = vld [vmem:[%s1 + $0xe4] sm:$0xf]
    %v93 = vld [vmem:[%s1 + $0xe8] sm:$0xf]
    %v94 = vld [vmem:[%s1 + $0xec] sm:$0xf]
    %v95 = vld [vmem:[%s1 + $0xf0] sm:$0xf]
    %v96 = vld [vmem:[%s1 + $0xf4] sm:$0xf]
    %v97 = vld [vmem:[%s1 + $0xf8] sm:$0xf]
    %v98 = vld [vmem:[%s1 + $0xfc] sm:$0xf]
    %v99 = vld [vmem:[%s1 + $0x100] sm:$0xf]
    %v100 = vld [vmem:[%s1 + $0x104] sm:$0xf]
    %v101 = vld [vmem:[%s1 + $0x108] sm:$0xf]
    %v102 = vld [vmem:[%s1 + $0x10c] sm:$0xf]
    %v103 = vld [vmem:[%s1 + $0x110] sm:$0xf]
    %v104 = vld [vmem:[%s1 + $0x114] sm:$0xf]
    %v105 = vld [vmem:[%s1 + $0x118] sm:$0xf]
    %v106 = vld [vmem:[%s1 + $0x11c] sm:$0xf]
    %v107 = vld [vmem:[%s1 + $0x120] sm:$0xf]
    %v108 = vld [vmem:[%s1 + $0x124] sm:$0xf]
    %v109 = vld [vmem:[%s1 + $0x128] sm:$0xf]
    %v110 = vld [vmem:[%s1 + $0x12c] sm:$0xf]
    %v111 = vld [vmem:[%s1 + $0x130] sm:$0xf]
    %v112 = vld [vmem:[%s1 + $0x134] sm:$0xf]
    %v113 = vld [vmem:[%s1 + $0x138] sm:$0xf]
    %v114 = vld [vmem:[%s1 + $0x13c] sm:$0xf]
    %v115 = vld [vmem:[%s1 + $0x140] sm:$0xf]
    %v116 = vld [vmem:[%s1 + $0x144] sm:$0xf]
    %v117 = vld [vmem:[%s1 + $0x148] sm:$0xf]
    %v118 = vld [vmem:[%s1 + $0x14c] sm:$0xf]
    %v119 = vld [vmem:[%s1 + $0x150] sm:$0xf]
    %v120 = vld [vmem:[%s1 + $0x154] sm:$0xf]
    %v121 = vld [vmem:[%s1 + $0x158] sm:$0xf]
    %v122 = vld [vmem:[%s1 + $0x15c] sm:$0xf]
    %v123 = vld [vmem:[%s1 + $0x160] sm:$0xf]
    %v124 = vld [vmem:[%s1 + $0x164] sm:$0xf]
    %v125 = vld [vmem:[%s1 + $0x168] sm:$0xf]
    %v126 = vld [vmem:[%s1 + $0x16c] sm:$0xf]
    %v127 = vld [vmem:[%s1 + $0x170] sm:$0xf]
    %v128 = vld [vmem:[%s1 + $0x174] sm:$0xf]
    %v129 = vld [vmem:[%s1 + $0x178] sm:$0xf]
    %v130 = vld [vmem:[%s1 + $0x17c] sm:$0xf]
    %v131 = vld [vmem:[%s1 + $0x180] sm:$0xf]
    %v132 = vld [vmem:[%s1 + $0x184] sm:$0xf]
    %v133 = vld [vmem:[%s1 + $0x188] sm:$0xf]
    %v134 = vld [vmem:[%s1 + $0x18c] sm:$0xf]
    %v135 = vld [vmem:[%s1 + $0x190] sm:$0xf]
    %v136 = vld [vmem:[%s1 + $0x194] sm:$0xf]
    %v137 = vld [vmem:[%s1 + $0x198] sm:$0xf]
    %v138 = vld [vmem:[%s1 + $0x19c] sm:$0xf]
    %v139 = vld [vmem:[%s1 + $0x1a0] sm:$0xf]
    %v140 = vld [vmem:[%s1 + $0x1a4] sm:$0xf]
    %v141 = vld [vmem:[%s1 + $0x1a8] sm:$0xf]
    %v142 = vld [vmem:[%s1 + $0x1ac] sm:$0xf]
    %v143 = vld [vmem:[%s1 + $0x1b0] sm:$0xf]
    %v144 = vld [vmem:[%s1 + $0x1b4] sm:$0xf]
    %v145 = vld [vmem:[%s1 + $0x1b8] sm:$0xf]
    %v146 = vld [vmem:[%s1 + $0x1bc] sm:$0xf]
    %v147 = vld [vmem:[%s1 + $0x1c0] sm:$0xf]
    %v148 = vld [vmem:[%s1 + $0x1c4] sm:$0xf]
    %v149 = vld [vmem:[%s1 + $0x1c8] sm:$0xf]
    %v150 = vld [vmem:[%s1 + $0x1cc] sm:$0xf]
    %v151 = vld [vmem:[%s1 + $0x1d0] sm:$0xf]
    %v152 = vld [vmem:[%s1 + $0x1d4] sm:$0xf]
    %v153 = vld [vmem:[%s1 + $0x1d8] sm:$0xf]
    %v154 = vld [vmem:[%s1 + $0x1dc] sm:$0xf]
    %v155 = vld [vmem:[%s1 + $0x1e0] sm:$0xf]
    %v156 = vld [vmem:[%s1 + $0x1e4] sm:$0xf]
    %v157 = vld [vmem:[%s1 + $0x1e8] sm:$0xf]
    %v158 = vld [vmem:[%s1 + $0x1ec] sm:$0xf]
    %v159 = vld [vmem:[%s1 + $0x1f0] sm:$0xf]
    %v160 = vld [vmem:[%s1 + $0x1f4] sm:$0xf]
    %v161 = vld [vmem:[%s1 + $0x1f8] sm:$0xf]
    %v162 = vld [vmem:[%s1 + $0x1fc] sm:$0xf]
    %v291 = vunpack.c.l.b16 %v35
    %v292 = vunpack.c.l.b16 %v36
    %v293 = vunpack.c.l.b16 %v37
    %v294 = vunpack.c.l.b16 %v38
    %v295 = vunpack.c.l.b16 %v39
    %v296 = vunpack.c.l.b16 %v40
    %v297 = vunpack.c.l.b16 %v41
    %v298 = vunpack.c.l.b16 %v42
    %v299 = vunpack.c.l.b16 %v43
    %v300 = vunpack.c.l.b16 %v44
    %v301 = vunpack.c.l.b16 %v45
    %v302 = vunpack.c.l.b16 %v46
    %v303 = vunpack.c.l.b16 %v47
    %v304 = vunpack.c.l.b16 %v48
    %v305 = vunpack.c.l.b16 %v49
    %v306 = vunpack.c.l.b16 %v50
    %v307 = vunpack.c.l.b16 %v51
    %v308 = vunpack.c.l.b16 %v52
    %v309 = vunpack.c.l.b16 %v53
    %v310 = vunpack.c.l.b16 %v54
    %v311 = vunpack.c.l.b16 %v55
    %v312 = vunpack.c.l.b16 %v56
    %v313 = vunpack.c.l.b16 %v57
    %v314 = vunpack.c.l.b16 %v58
    %v315 = vunpack.c.l.b16 %v59
    %v316 = vunpack.c.l.b16 %v60
    %v317 = vunpack.c.l.b16 %v61
    %v318 = vunpack.c.l.b16 %v62
    %v319 = vunpack.c.l.b16 %v63
    %v320 = vunpack.c.l.b16 %v64
    %v321 = vunpack.c.l.b16 %v65
    %v322 = vunpack.c.l.b16 %v66
    %v323 = vunpack.c.l.b16 %v67
    %v324 = vunpack.c.l.b16 %v68
    %v325 = vunpack.c.l.b16 %v69
    %v326 = vunpack.c.l.b16 %v70
    %v327 = vunpack.c.l.b16 %v71
    %v328 = vunpack.c.l.b16 %v72
    %v329 = vunpack.c.l.b16 %v73
    %v330 = vunpack.c.l.b16 %v74
    %v331 = vunpack.c.l.b16 %v75
    %v332 = vunpack.c.l.b16 %v76
    %v333 = vunpack.c.l.b16 %v77
    %v334 = vunpack.c.l.b16 %v78
    %v335 = vunpack.c.l.b16 %v79
    %v336 = vunpack.c.l.b16 %v80
    %v337 = vunpack.c.l.b16 %v81
    %v338 = vunpack.c.l.b16 %v82
    %v339 = vunpack.c.l.b16 %v83
    %v340 = vunpack.c.l.b16 %v84
    %v341 = vunpack.c.l.b16 %v85
    %v342 = vunpack.c.l.b16 %v86
    %v343 = vunpack.c.l.b16 %v87
    %v344 = vunpack.c.l.b16 %v88
    %v345 = vunpack.c.l.b16 %v89
    %v346 = vunpack.c.l.b16 %v90
    %v347 = vunpack.c.l.b16 %v91
    %v348 = vunpack.c.l.b16 %v92
    %v349 = vunpack.c.l.b16 %v93
    %v350 = vunpack.c.l.b16 %v94
    %v351 = vunpack.c.l.b16 %v95
    %v352 = vunpack.c.l.b16 %v96
    %v353 = vunpack.c.l.b16 %v97
    %v354 = vunpack.c.l.b16 %v98
    %v355 = vunpack.c.l.b16 %v99
    %v356 = vunpack.c.l.b16 %v100
    %v357 = vunpack.c.l.b16 %v101
    %v358 = vunpack.c.l.b16 %v102
    %v359 = vunpack.c.l.b16 %v103
    %v360 = vunpack.c.l.b16 %v104
    %v361 = vunpack.c.l.b16 %v105
    %v362 = vunpack.c.l.b16 %v106
    %v363 = vunpack.c.l.b16 %v107
    %v364 = vunpack.c.l.b16 %v108
    %v365 = vunpack.c.l.b16 %v109
    %v366 = vunpack.c.l.b16 %v110
    %v367 = vunpack.c.l.b16 %v111
    %v368 = vunpack.c.l.b16 %v112
    %v369 = vunpack.c.l.b16 %v113
    %v370 = vunpack.c.l.b16 %v114
    %v371 = vunpack.c.l.b16 %v115
    %v372 = vunpack.c.l.b16 %v116
    %v373 = vunpack.c.l.b16 %v117
    %v374 = vunpack.c.l.b16 %v118
    %v375 = vunpack.c.l.b16 %v119
    %v376 = vunpack.c.l.b16 %v120
    %v377 = vunpack.c.l.b16 %v121
    %v378 = vunpack.c.l.b16 %v122
    %v379 = vunpack.c.l.b16 %v123
    %v380 = vunpack.c.l.b16 %v124
    %v381 = vunpack.c.l.b16 %v125
    %v382 = vunpack.c.l.b16 %v126
    %v383 = vunpack.c.l.b16 %v127
    %v384 = vunpack.c.l.b16 %v128
    %v385 = vunpack.c.l.b16 %v129
    %v386 = vunpack.c.l.b16 %v130
    %v387 = vunpack.c.l.b16 %v131
    %v388 = vunpack.c.l.b16 %v132
    %v389 = vunpack.c.l.b16 %v133
    %v390 = vunpack.c.l.b16 %v134
    %v391 = vunpack.c.l.b16 %v135
    %v392 = vunpack.c.l.b16 %v136
    %v393 = vunpack.c.l.b16 %v137
    %v394 = vunpack.c.l.b16 %v138
    %v395 = vunpack.c.l.b16 %v139
    %v396 = vunpack.c.l.b16 %v140
    %v397 = vunpack.c.l.b16 %v141
    %v398 = vunpack.c.l.b16 %v142
    %v399 = vunpack.c.l.b16 %v143
    %v400 = vunpack.c.l.b16 %v144
    %v401 = vunpack.c.l.b16 %v145
    %v402 = vunpack.c.l.b16 %v146
    %v403 = vunpack.c.l.b16 %v147
    %v404 = vunpack.c.l.b16 %v148
    %v405 = vunpack.c.l.b16 %v149
    %v406 = vunpack.c.l.b16 %v150
    %v407 = vunpack.c.l.b16 %v151
    %v408 = vunpack.c.l.b16 %v152
    %v409 = vunpack.c.l.b16 %v153
    %v410 = vunpack.c.l.b16 %v154
    %v411 = vunpack.c.l.b16 %v155
    %v412 = vunpack.c.l.b16 %v156
    %v413 = vunpack.c.l.b16 %v157
    %v414 = vunpack.c.l.b16 %v158
    %v415 = vunpack.c.l.b16 %v159
    %v416 = vunpack.c.l.b16 %v160
    %v417 = vunpack.c.l.b16 %v161
    %v418 = vunpack.c.l.b16 %v162
    %v419 = vpack.c.b16 %v292, %v291
    %v420 = vpack.c.b16 %v294, %v293
    %v421 = vpack.c.b16 %v296, %v295
    %v422 = vpack.c.b16 %v298, %v297
    %v423 = vpack.c.b16 %v300, %v299
    %v424 = vpack.c.b16 %v302, %v301
    %v425 = vpack.c.b16 %v304, %v303
    %v426 = vpack.c.b16 %v306, %v305
    %v427 = vpack.c.b16 %v308, %v307
    %v428 = vpack.c.b16 %v310, %v309
    %v429 = vpack.c.b16 %v312, %v311
    %v430 = vpack.c.b16 %v314, %v313
    %v431 = vpack.c.b16 %v316, %v315
    %v432 = vpack.c.b16 %v318, %v317
    %v433 = vpack.c.b16 %v320, %v319
    %v434 = vpack.c.b16 %v322, %v321
    %v435 = vpack.c.b16 %v324, %v323
    %v436 = vpack.c.b16 %v326, %v325
    %v437 = vpack.c.b16 %v328, %v327
    %v438 = vpack.c.b16 %v330, %v329
    %v439 = vpack.c.b16 %v332, %v331
    %v440 = vpack.c.b16 %v334, %v333
    %v441 = vpack.c.b16 %v336, %v335
    %v442 = vpack.c.b16 %v338, %v337
    %v443 = vpack.c.b16 %v340, %v339
    %v444 = vpack.c.b16 %v342, %v341
    %v445 = vpack.c.b16 %v344, %v343
    %v446 = vpack.c.b16 %v346, %v345
    %v447 = vpack.c.b16 %v348, %v347
    %v448 = vpack.c.b16 %v350, %v349
    %v449 = vpack.c.b16 %v352, %v351
    %v450 = vpack.c.b16 %v354, %v353
    %v451 = vpack.c.b16 %v356, %v355
    %v452 = vpack.c.b16 %v358, %v357
    %v453 = vpack.c.b16 %v360, %v359
    %v454 = vpack.c.b16 %v362, %v361
    %v455 = vpack.c.b16 %v364, %v363
    %v456 = vpack.c.b16 %v366, %v365
    %v457 = vpack.c.b16 %v368, %v367
    %v458 = vpack.c.b16 %v370, %v369
    %v459 = vpack.c.b16 %v372, %v371
    %v460 = vpack.c.b16 %v374, %v373
    %v461 = vpack.c.b16 %v376, %v375
    %v462 = vpack.c.b16 %v378, %v377
    %v463 = vpack.c.b16 %v380, %v379
    %v464 = vpack.c.b16 %v382, %v381
    %v465 = vpack.c.b16 %v384, %v383
    %v466 = vpack.c.b16 %v386, %v385
    %v467 = vpack.c.b16 %v388, %v387
    %v468 = vpack.c.b16 %v390, %v389
    %v469 = vpack.c.b16 %v392, %v391
    %v470 = vpack.c.b16 %v394, %v393
    %v471 = vpack.c.b16 %v396, %v395
    %v472 = vpack.c.b16 %v398, %v397
    %v473 = vpack.c.b16 %v400, %v399
    %v474 = vpack.c.b16 %v402, %v401
    %v475 = vpack.c.b16 %v404, %v403
    %v476 = vpack.c.b16 %v406, %v405
    %v477 = vpack.c.b16 %v408, %v407
    %v478 = vpack.c.b16 %v410, %v409
    %v479 = vpack.c.b16 %v412, %v411
    %v480 = vpack.c.b16 %v414, %v413
    %v481 = vpack.c.b16 %v416, %v415
    %v482 = vpack.c.b16 %v418, %v417
    %547 = vmatprep.subr.bf16.mxu0 0
    %548 = vmatpush1.bf16.msra.mxu0 %v419
    %549 = vmatprep.subr.bf16.mxu0 0
    %550 = vmatpush1.bf16.msra.mxu0 %v420
    %551 = vmatprep.subr.bf16.mxu0 0
    %552 = vmatpush1.bf16.msra.mxu0 %v421
    %553 = vmatprep.subr.bf16.mxu0 0
    %554 = vmatpush1.bf16.msra.mxu0 %v422
    %555 = vmatprep.subr.bf16.mxu0 0
    %556 = vmatpush1.bf16.msra.mxu0 %v423
    %557 = vmatprep.subr.bf16.mxu0 0
    %558 = vmatpush1.bf16.msra.mxu0 %v424
    %559 = vmatprep.subr.bf16.mxu0 0
    %560 = vmatpush1.bf16.msra.mxu0 %v425
    %561 = vmatprep.subr.bf16.mxu0 0
    %562 = vmatpush1.bf16.msra.mxu0 %v426
    %563 = vmatprep.subr.bf16.mxu0 0
    %564 = vmatpush1.bf16.msra.mxu0 %v427
    %565 = vmatprep.subr.bf16.mxu0 0
    %566 = vmatpush1.bf16.msra.mxu0 %v428
    %567 = vmatprep.subr.bf16.mxu0 0
    %568 = vmatpush1.bf16.msra.mxu0 %v429
    %569 = vmatprep.subr.bf16.mxu0 0
    %570 = vmatpush1.bf16.msra.mxu0 %v430
    %571 = vmatprep.subr.bf16.mxu0 0
    %572 = vmatpush1.bf16.msra.mxu0 %v431
    %573 = vmatprep.subr.bf16.mxu0 0
    %574 = vmatpush1.bf16.msra.mxu0 %v432
    %575 = vmatprep.subr.bf16.mxu0 0
    %576 = vmatpush1.bf16.msra.mxu0 %v433
    %577 = vmatprep.subr.bf16.mxu0 0
    %578 = vmatpush1.bf16.msra.mxu0 %v434
    %579 = vmatprep.mubr.bf16.mxu0 %v28
    %580 = vmatmul.mubr.bf16.gmra.mrb[0].mxu0 %v27
    %v581 = vpop.f32.mrb[0].mxu0
    %v582 = vadd.f32 0.0, %v581
    %v583 = vpop.f32.mrb[0].mxu0
    %v584 = vpop.f32.mrb[0].mxu0
    %v585 = vpop.f32.mrb[0].mxu0
    %586 = vdwg.mxu0
    %587 = vmatprep.subr.bf16.mxu0 0
    %588 = vmatpush1.bf16.msra.mxu0 %v435
    %589 = vmatprep.subr.bf16.mxu0 0
    %590 = vmatpush1.bf16.msra.mxu0 %v436
    %591 = vmatprep.subr.bf16.mxu0 0
    %592 = vmatpush1.bf16.msra.mxu0 %v437
    %593 = vmatprep.subr.bf16.mxu0 0
    %594 = vmatpush1.bf16.msra.mxu0 %v438
    %595 = vmatprep.subr.bf16.mxu0 0
    %596 = vmatpush1.bf16.msra.mxu0 %v439
    %597 = vmatprep.subr.bf16.mxu0 0
    %598 = vmatpush1.bf16.msra.mxu0 %v440
    %599 = vmatprep.subr.bf16.mxu0 0
    %600 = vmatpush1.bf16.msra.mxu0 %v441
    %601 = vmatprep.subr.bf16.mxu0 0
    %602 = vmatpush1.bf16.msra.mxu0 %v442
    %603 = vmatprep.subr.bf16.mxu0 0
    %604 = vmatpush1.bf16.msra.mxu0 %v443
    %605 = vmatprep.subr.bf16.mxu0 0
    %606 = vmatpush1.bf16.msra.mxu0 %v444
    %607 = vmatprep.subr.bf16.mxu0 0
    %608 = vmatpush1.bf16.msra.mxu0 %v445
    %609 = vmatprep.subr.bf16.mxu0 0
    %610 = vmatpush1.bf16.msra.mxu0 %v446
    %611 = vmatprep.subr.bf16.mxu0 0
    %612 = vmatpush1.bf16.msra.mxu0 %v447
    %613 = vmatprep.subr.bf16.mxu0 0
    %614 = vmatpush1.bf16.msra.mxu0 %v448
    %615 = vmatprep.subr.bf16.mxu0 0
    %616 = vmatpush1.bf16.msra.mxu0 %v449
    %617 = vmatprep.subr.bf16.mxu0 0
    %618 = vmatpush1.bf16.msra.mxu0 %v450
    %619 = vmatprep.mubr.bf16.mxu0 %v30
    %620 = vmatmul.mubr.bf16.gmra.mrb[0].mxu0 %v29
    %v621 = vpop.f32.mrb[0].mxu0
    %v622 = vadd.f32 %v582, %v621
    %v623 = vpop.f32.mrb[0].mxu0
    %v624 = vpop.f32.mrb[0].mxu0
    %v625 = vpop.f32.mrb[0].mxu0
    %626 = vdwg.mxu0
    %627 = vmatprep.subr.bf16.mxu0 0
    %628 = vmatpush1.bf16.msra.mxu0 %v451
    %629 = vmatprep.subr.bf16.mxu0 0
    %630 = vmatpush1.bf16.msra.mxu0 %v452
    %631 = vmatprep.subr.bf16.mxu0 0
    %632 = vmatpush1.bf16.msra.mxu0 %v453
    %633 = vmatprep.subr.bf16.mxu0 0
    %634 = vmatpush1.bf16.msra.mxu0 %v454
    %635 = vmatprep.subr.bf16.mxu0 0
    %636 = vmatpush1.bf16.msra.mxu0 %v455
    %637 = vmatprep.subr.bf16.mxu0 0
    %638 = vmatpush1.bf16.msra.mxu0 %v456
    %639 = vmatprep.subr.bf16.mxu0 0
    %640 = vmatpush1.bf16.msra.mxu0 %v457
    %641 = vmatprep.subr.bf16.mxu0 0
    %642 = vmatpush1.bf16.msra.mxu0 %v458
    %643 = vmatprep.subr.bf16.mxu0 0
    %644 = vmatpush1.bf16.msra.mxu0 %v459
    %645 = vmatprep.subr.bf16.mxu0 0
    %646 = vmatpush1.bf16.msra.mxu0 %v460
    %647 = vmatprep.subr.bf16.mxu0 0
    %648 = vmatpush1.bf16.msra.mxu0 %v461
    %649 = vmatprep.subr.bf16.mxu0 0
    %650 = vmatpush1.bf16.msra.mxu0 %v462
    %651 = vmatprep.subr.bf16.mxu0 0
    %652 = vmatpush1.bf16.msra.mxu0 %v463
    %653 = vmatprep.subr.bf16.mxu0 0
    %654 = vmatpush1.bf16.msra.mxu0 %v464
    %655 = vmatprep.subr.bf16.mxu0 0
    %656 = vmatpush1.bf16.msra.mxu0 %v465
    %657 = vmatprep.subr.bf16.mxu0 0
    %658 = vmatpush1.bf16.msra.mxu0 %v466
    %659 = vmatprep.mubr.bf16.mxu0 %v32
    %660 = vmatmul.mubr.bf16.gmra.mrb[0].mxu0 %v31
    %v661 = vpop.f32.mrb[0].mxu0
    %v662 = vadd.f32 %v622, %v661
    %v663 = vpop.f32.mrb[0].mxu0
    %v664 = vpop.f32.mrb[0].mxu0
    %v665 = vpop.f32.mrb[0].mxu0
    %666 = vdwg.mxu0
    %667 = vmatprep.subr.bf16.mxu0 0
    %668 = vmatpush1.bf16.msra.mxu0 %v467
    %669 = vmatprep.subr.bf16.mxu0 0
    %670 = vmatpush1.bf16.msra.mxu0 %v468
    %671 = vmatprep.subr.bf16.mxu0 0
    %672 = vmatpush1.bf16.msra.mxu0 %v469
    %673 = vmatprep.subr.bf16.mxu0 0
    %674 = vmatpush1.bf16.msra.mxu0 %v470
    %675 = vmatprep.subr.bf16.mxu0 0
    %676 = vmatpush1.bf16.msra.mxu0 %v471
    %677 = vmatprep.subr.bf16.mxu0 0
    %678 = vmatpush1.bf16.msra.mxu0 %v472
    %679 = vmatprep.subr.bf16.mxu0 0
    %680 = vmatpush1.bf16.msra.mxu0 %v473
    %681 = vmatprep.subr.bf16.mxu0 0
    %682 = vmatpush1.bf16.msra.mxu0 %v474
    %683 = vmatprep.subr.bf16.mxu0 0
    %684 = vmatpush1.bf16.msra.mxu0 %v475
    %685 = vmatprep.subr.bf16.mxu0 0
    %686 = vmatpush1.bf16.msra.mxu0 %v476
    %687 = vmatprep.subr.bf16.mxu0 0
    %688 = vmatpush1.bf16.msra.mxu0 %v477
    %689 = vmatprep.subr.bf16.mxu0 0
    %690 = vmatpush1.bf16.msra.mxu0 %v478
    %691 = vmatprep.subr.bf16.mxu0 0
    %692 = vmatpush1.bf16.msra.mxu0 %v479
    %693 = vmatprep.subr.bf16.mxu0 0
    %694 = vmatpush1.bf16.msra.mxu0 %v480
    %695 = vmatprep.subr.bf16.mxu0 0
    %696 = vmatpush1.bf16.msra.mxu0 %v481
    %697 = vmatprep.subr.bf16.mxu0 0
    %698 = vmatpush1.bf16.msra.mxu0 %v482
    %699 = vmatprep.mubr.bf16.mxu0 %v34
    %700 = vmatmul.mubr.bf16.gmra.mrb[0].mxu0 %v33
    %v701 = vpop.f32.mrb[0].mxu0
    %v702 = vadd.f32 %v662, %v701
    %v703 = vpop.f32.mrb[0].mxu0
    %v704 = vpop.f32.mrb[0].mxu0
    %v705 = vpop.f32.mrb[0].mxu0
    %706 = vdwg.mxu0
    %v707 = vpack.c.bf16 %v702, %v702
    %v708 = vld [vmem:[%s2] sm:$0xff]
    %v709 = vld [vmem:[%s2 + $0x8] sm:$0xff]
    %v710 = vld [vmem:[%s2 + $0x10] sm:$0xff]
    %v711 = vld [vmem:[%s2 + $0x18] sm:$0xff]
    %v712 = vld [vmem:[%s2 + $0x20] sm:$0xff]
    %v713 = vld [vmem:[%s2 + $0x28] sm:$0xff]
    %v714 = vld [vmem:[%s2 + $0x30] sm:$0xff]
    %v715 = vld [vmem:[%s2 + $0x38] sm:$0xff]
    %v716 = vld [vmem:[%s2 + $0x40] sm:$0xff]
    %v717 = vld [vmem:[%s2 + $0x48] sm:$0xff]
    %v718 = vld [vmem:[%s2 + $0x50] sm:$0xff]
    %v719 = vld [vmem:[%s2 + $0x58] sm:$0xff]
    %v720 = vld [vmem:[%s2 + $0x60] sm:$0xff]
    %v721 = vld [vmem:[%s2 + $0x68] sm:$0xff]
    %v722 = vld [vmem:[%s2 + $0x70] sm:$0xff]
    %v723 = vld [vmem:[%s2 + $0x78] sm:$0xff]
    %v724 = vld [vmem:[%s3] sm:$0xff]
    %v726 = vlaneseq
    %v727 = vshrl.u32 %v726, 7
    %v728 = vsub.s32 0, %v727
    %v729 = vrot.slane %v724, %v728
    %v730 = vlaneseq
    %v731 = vshrl.u32 %v730, 7
    %v732 = vsub.s32 1, %v731
    %v733 = vrot.slane %v724, %v732
    %v734 = vlaneseq
    %v735 = vshrl.u32 %v734, 7
    %v736 = vsub.s32 2, %v735
    %v737 = vrot.slane %v724, %v736
    %v738 = vlaneseq
    %v739 = vshrl.u32 %v738, 7
    %v740 = vsub.s32 3, %v739
    %v741 = vrot.slane %v724, %v740
    %v742 = vlaneseq
    %v743 = vshrl.u32 %v742, 7
    %v744 = vsub.s32 4, %v743
    %v745 = vrot.slane %v724, %v744
    %v746 = vlaneseq
    %v747 = vshrl.u32 %v746, 7
    %v748 = vsub.s32 5, %v747
    %v749 = vrot.slane %v724, %v748
    %v750 = vlaneseq
    %v751 = vshrl.u32 %v750, 7
    %v752 = vsub.s32 6, %v751
    %v753 = vrot.slane %v724, %v752
    %v754 = vlaneseq
    %v755 = vshrl.u32 %v754, 7
    %v756 = vsub.s32 7, %v755
    %v757 = vrot.slane %v724, %v756
    %v782 = vunpack.c.l.b16 %v708
    %v783 = vunpack.c.h.b16 %v708
    %v784 = vunpack.c.l.b16 %v709
    %v785 = vunpack.c.h.b16 %v709
    %v786 = vunpack.c.l.b16 %v710
    %v787 = vunpack.c.h.b16 %v710
    %v788 = vunpack.c.l.b16 %v711
    %v789 = vunpack.c.h.b16 %v711
    %v790 = vunpack.c.l.b16 %v712
    %v791 = vunpack.c.h.b16 %v712
    %v792 = vunpack.c.l.b16 %v713
    %v793 = vunpack.c.h.b16 %v713
    %v794 = vunpack.c.l.b16 %v714
    %v795 = vunpack.c.h.b16 %v714
    %v796 = vunpack.c.l.b16 %v715
    %v797 = vunpack.c.h.b16 %v715
    %v798 = vunpack.c.l.b16 %v716
    %v799 = vunpack.c.h.b16 %v716
    %v800 = vunpack.c.l.b16 %v717
    %v801 = vunpack.c.h.b16 %v717
    %v802 = vunpack.c.l.b16 %v718
    %v803 = vunpack.c.h.b16 %v718
    %v804 = vunpack.c.l.b16 %v719
    %v805 = vunpack.c.h.b16 %v719
    %v806 = vunpack.c.l.b16 %v720
    %v807 = vunpack.c.h.b16 %v720
    %v808 = vunpack.c.l.b16 %v721
    %v809 = vunpack.c.h.b16 %v721
    %v810 = vunpack.c.l.b16 %v722
    %v811 = vunpack.c.h.b16 %v722
    %v812 = vunpack.c.l.b16 %v723
    %v813 = vunpack.c.h.b16 %v723
    %v814 = vpack.c.b16 %v790, %v782
    %v815 = vpack.c.b16 %v791, %v783
    %v816 = vpack.c.b16 %v792, %v784
    %v817 = vpack.c.b16 %v793, %v785
    %v818 = vpack.c.b16 %v794, %v786
    %v819 = vpack.c.b16 %v795, %v787
    %v820 = vpack.c.b16 %v796, %v788
    %v821 = vpack.c.b16 %v797, %v789
    %v822 = vpack.c.b16 %v806, %v798
    %v823 = vpack.c.b16 %v807, %v799
    %v824 = vpack.c.b16 %v808, %v800
    %v825 = vpack.c.b16 %v809, %v801
    %v826 = vpack.c.b16 %v810, %v802
    %v827 = vpack.c.b16 %v811, %v803
    %v828 = vpack.c.b16 %v812, %v804
    %v829 = vpack.c.b16 %v813, %v805
    %vm846 = vcmask 261120
    %v848 = vsel %vm846, %v707, 0
    %850 = vmatprep.subr.bf16.mxu0 %v815
    %851 = vmatpush1.bf16.msra.mxu0 %v814
    %852 = vmatprep.subr.bf16.mxu0 %v823
    %853 = vmatpush1.bf16.msra.mxu0 %v822
    %854 = vmatprep.subr.bf16.mxu0 0
    %855 = vmatpush1.bf16.msra.mxu0 0
    %856 = vmatprep.subr.bf16.mxu0 0
    %857 = vmatpush1.bf16.msra.mxu0 0
    %858 = vmatprep.subr.bf16.mxu0 0
    %859 = vmatpush1.bf16.msra.mxu0 0
    %860 = vmatprep.subr.bf16.mxu0 0
    %861 = vmatpush1.bf16.msra.mxu0 0
    %862 = vmatprep.subr.bf16.mxu0 0
    %863 = vmatpush1.bf16.msra.mxu0 0
    %864 = vmatprep.subr.bf16.mxu0 0
    %865 = vmatpush1.bf16.msra.mxu0 0
    %866 = vmatprep.subr.bf16.mxu0 0
    %867 = vmatpush1.bf16.msra.mxu0 0
    %868 = vmatprep.subr.bf16.mxu0 0
    %869 = vmatpush1.bf16.msra.mxu0 0
    %870 = vmatprep.subr.bf16.mxu0 0
    %871 = vmatpush1.bf16.msra.mxu0 0
    %872 = vmatprep.subr.bf16.mxu0 0
    %873 = vmatpush1.bf16.msra.mxu0 0
    %874 = vmatprep.subr.bf16.mxu0 0
    %875 = vmatpush1.bf16.msra.mxu0 0
    %876 = vmatprep.subr.bf16.mxu0 0
    %877 = vmatpush1.bf16.msra.mxu0 0
    %878 = vmatprep.subr.bf16.mxu0 0
    %879 = vmatpush1.bf16.msra.mxu0 0
    %880 = vmatprep.subr.bf16.mxu0 0
    %881 = vmatpush1.bf16.msra.mxu0 0
    %882 = vmatprep.mubr.bf16.mxu0 0
    %883 = vmatmul.mubr.bf16.gmra.mrb[0].mxu0 %v848
    %v884 = vpop.f32.mrb[0].mxu0
    %v885 = vadd.f32 %v729, %v884
    %v886 = vpop.f32.mrb[0].mxu0
    %v887 = vadd.f32 %v733, %v886
    %v888 = vpop.f32.mrb[0].mxu0
    %v889 = vpop.f32.mrb[0].mxu0
    %890 = vdwg.mxu0
    %891 = vmatprep.subr.bf16.mxu0 %v817
    %892 = vmatpush1.bf16.msra.mxu0 %v816
    %893 = vmatprep.subr.bf16.mxu0 %v825
    %894 = vmatpush1.bf16.msra.mxu0 %v824
    %895 = vmatprep.subr.bf16.mxu0 0
    %896 = vmatpush1.bf16.msra.mxu0 0
    %897 = vmatprep.subr.bf16.mxu0 0
    %898 = vmatpush1.bf16.msra.mxu0 0
    %899 = vmatprep.subr.bf16.mxu0 0
    %900 = vmatpush1.bf16.msra.mxu0 0
    %901 = vmatprep.subr.bf16.mxu0 0
    %902 = vmatpush1.bf16.msra.mxu0 0
    %903 = vmatprep.subr.bf16.mxu0 0
    %904 = vmatpush1.bf16.msra.mxu0 0
    %905 = vmatprep.subr.bf16.mxu0 0
    %906 = vmatpush1.bf16.msra.mxu0 0
    %907 = vmatprep.subr.bf16.mxu0 0
    %908 = vmatpush1.bf16.msra.mxu0 0
    %909 = vmatprep.subr.bf16.mxu0 0
    %910 = vmatpush1.bf16.msra.mxu0 0
    %911 = vmatprep.subr.bf16.mxu0 0
    %912 = vmatpush1.bf16.msra.mxu0 0
    %913 = vmatprep.subr.bf16.mxu0 0
    %914 = vmatpush1.bf16.msra.mxu0 0
    %915 = vmatprep.subr.bf16.mxu0 0
    %916 = vmatpush1.bf16.msra.mxu0 0
    %917 = vmatprep.subr.bf16.mxu0 0
    %918 = vmatpush1.bf16.msra.mxu0 0
    %919 = vmatprep.subr.bf16.mxu0 0
    %920 = vmatpush1.bf16.msra.mxu0 0
    %921 = vmatprep.subr.bf16.mxu0 0
    %922 = vmatpush1.bf16.msra.mxu0 0
    %923 = vmatprep.mubr.bf16.mxu0 0
    %924 = vmatmul.mubr.bf16.gmra.mrb[0].mxu0 %v848
    %v925 = vpop.f32.mrb[0].mxu0
    %v926 = vadd.f32 %v737, %v925
    %v927 = vpop.f32.mrb[0].mxu0
    %v928 = vadd.f32 %v741, %v927
    %v929 = vpop.f32.mrb[0].mxu0
    %v930 = vpop.f32.mrb[0].mxu0
    %931 = vdwg.mxu0
    %932 = vmatprep.subr.bf16.mxu0 %v819
    %933 = vmatpush1.bf16.msra.mxu0 %v818
    %934 = vmatprep.subr.bf16.mxu0 %v827
    %935 = vmatpush1.bf16.msra.mxu0 %v826
    %936 = vmatprep.subr.bf16.mxu0 0
    %937 = vmatpush1.bf16.msra.mxu0 0
    %938 = vmatprep.subr.bf16.mxu0 0
    %939 = vmatpush1.bf16.msra.mxu0 0
    %940 = vmatprep.subr.bf16.mxu0 0
    %941 = vmatpush1.bf16.msra.mxu0 0
    %942 = vmatprep.subr.bf16.mxu0 0
    %943 = vmatpush1.bf16.msra.mxu0 0
    %944 = vmatprep.subr.bf16.mxu0 0
    %945 = vmatpush1.bf16.msra.mxu0 0
    %946 = vmatprep.subr.bf16.mxu0 0
    %947 = vmatpush1.bf16.msra.mxu0 0
    %948 = vmatprep.subr.bf16.mxu0 0
    %949 = vmatpush1.bf16.msra.mxu0 0
    %950 = vmatprep.subr.bf16.mxu0 0
    %951 = vmatpush1.bf16.msra.mxu0 0
    %952 = vmatprep.subr.bf16.mxu0 0
    %953 = vmatpush1.bf16.msra.mxu0 0
    %954 = vmatprep.subr.bf16.mxu0 0
    %955 = vmatpush1.bf16.msra.mxu0 0
    %956 = vmatprep.subr.bf16.mxu0 0
    %957 = vmatpush1.bf16.msra.mxu0 0
    %958 = vmatprep.subr.bf16.mxu0 0
    %959 = vmatpush1.bf16.msra.mxu0 0
    %960 = vmatprep.subr.bf16.mxu0 0
    %961 = vmatpush1.bf16.msra.mxu0 0
    %962 = vmatprep.subr.bf16.mxu0 0
    %963 = vmatpush1.bf16.msra.mxu0 0
    %964 = vmatprep.mubr.bf16.mxu0 0
    %965 = vmatmul.mubr.bf16.gmra.mrb[0].mxu0 %v848
    %v966 = vpop.f32.mrb[0].mxu0
    %v967 = vadd.f32 %v745, %v966
    %v968 = vpop.f32.mrb[0].mxu0
    %v969 = vadd.f32 %v749, %v968
    %v970 = vpop.f32.mrb[0].mxu0
    %v971 = vpop.f32.mrb[0].mxu0
    %972 = vdwg.mxu0
    %973 = vmatprep.subr.bf16.mxu0 %v821
    %974 = vmatpush1.bf16.msra.mxu0 %v820
    %975 = vmatprep.subr.bf16.mxu0 %v829
    %976 = vmatpush1.bf16.msra.mxu0 %v828
    %977 = vmatprep.subr.bf16.mxu0 0
    %978 = vmatpush1.bf16.msra.mxu0 0
    %979 = vmatprep.subr.bf16.mxu0 0
    %980 = vmatpush1.bf16.msra.mxu0 0
    %981 = vmatprep.subr.bf16.mxu0 0
    %982 = vmatpush1.bf16.msra.mxu0 0
    %983 = vmatprep.subr.bf16.mxu0 0
    %984 = vmatpush1.bf16.msra.mxu0 0
    %985 = vmatprep.subr.bf16.mxu0 0
    %986 = vmatpush1.bf16.msra.mxu0 0
    %987 = vmatprep.subr.bf16.mxu0 0
    %988 = vmatpush1.bf16.msra.mxu0 0
    %989 = vmatprep.subr.bf16.mxu0 0
    %990 = vmatpush1.bf16.msra.mxu0 0
    %991 = vmatprep.subr.bf16.mxu0 0
    %992 = vmatpush1.bf16.msra.mxu0 0
    %993 = vmatprep.subr.bf16.mxu0 0
    %994 = vmatpush1.bf16.msra.mxu0 0
    %995 = vmatprep.subr.bf16.mxu0 0
    %996 = vmatpush1.bf16.msra.mxu0 0
    %997 = vmatprep.subr.bf16.mxu0 0
    %998 = vmatpush1.bf16.msra.mxu0 0
    %999 = vmatprep.subr.bf16.mxu0 0
    %1000 = vmatpush1.bf16.msra.mxu0 0
    %1001 = vmatprep.subr.bf16.mxu0 0
    %1002 = vmatpush1.bf16.msra.mxu0 0
    %1003 = vmatprep.subr.bf16.mxu0 0
    %1004 = vmatpush1.bf16.msra.mxu0 0
    %1005 = vmatprep.mubr.bf16.mxu0 0
    %1006 = vmatmul.mubr.bf16.gmra.mrb[0].mxu0 %v848
    %v1007 = vpop.f32.mrb[0].mxu0
    %v1008 = vadd.f32 %v753, %v1007
    %v1009 = vpop.f32.mrb[0].mxu0
    %v1010 = vadd.f32 %v757, %v1009
    %v1011 = vpop.f32.mrb[0].mxu0
    %v1012 = vpop.f32.mrb[0].mxu0
    %1013 = vdwg.mxu0
    %v1014 = vpack.c.bf16 %v885, %v885
    %v1015 = vpack.c.bf16 %v887, %v887
    %v1016 = vpack.c.bf16 %v926, %v926
    %v1017 = vpack.c.bf16 %v928, %v928
    %v1018 = vpack.c.bf16 %v967, %v967
    %v1019 = vpack.c.bf16 %v969, %v969
    %v1020 = vpack.c.bf16 %v1008, %v1008
    %v1021 = vpack.c.bf16 %v1010, %v1010
    %v1030 = vunpack.c.l.b16 %v1014
    %v1031 = vunpack.c.l.b16 %v1015
    %v1032 = vunpack.c.l.b16 %v1016
    %v1033 = vunpack.c.l.b16 %v1017
    %v1034 = vunpack.c.l.b16 %v1018
    %v1035 = vunpack.c.l.b16 %v1019
    %v1036 = vunpack.c.l.b16 %v1020
    %v1037 = vunpack.c.l.b16 %v1021
    %v1038 = vpack.c.b16 %v1031, %v1030
    %v1039 = vpack.c.b16 %v1033, %v1032
    %v1040 = vpack.c.b16 %v1035, %v1034
    %v1041 = vpack.c.b16 %v1037, %v1036
    %1046 = vst [vmem:[#allocation2] sm:$0xff] %v1038
    %1047 = vst [vmem:[#allocation2 + $0x8] sm:$0xff] %v1039
    %1048 = vst [vmem:[#allocation2 + $0x10] sm:$0xff] %v1040
    %1049 = vst [vmem:[#allocation2 + $0x18] sm:$0xff] %v1041
    // Predicated region
    $region18: #{tpu_custom_call.1} parent=1 // pred_check
      _
    $region19: #{tpu_custom_call.1} parent=1 // pred_check_branch
      %1051 = sbr.rel (0) target = $region21
    $region20: #{tpu_custom_call.1} parent=1 // pred_region
      %s1053 = ssub.s32 512, 512
      %1054 = vsyncadd [#allocation3], %s1053
      %s1056 = sshll.u32 [#allocation2], 4
      %s1057 = int_to_ptr.vmem [resolvable:$true] %s1056
      %1059 = dma.vmem_to_hbm [thread:$0]  %s1057, 512, %s4, [#allocation3]
    $region21: #{tpu_custom_call.1} parent=1 // pred_fallthru
      _
    // Predicated region
    $region22: #{tpu_custom_call.1} parent=1 // pred_check
      _
    $region23: #{tpu_custom_call.1} parent=1 // pred_check_branch
      %1061 = sbr.rel (0) target = $region25
    $region24: #{tpu_custom_call.1} parent=1 // pred_region
      %1062 = dma.done [#allocation3], 512
    $region25: #{tpu_custom_call.1} parent=1 // pred_fallthru
      _
    %1063 = vsyncpa [#allocation3], 1

</llo_original>
